<compile_context>
chip_gen: v7x
topology: tpu7x:2x2x1
jax: 0.10.0
libtpu: 0.0.40
codegen_flags: <defaults>
</compile_context>

<pallas_src>
import jax
import jax.numpy as jnp
from jax.experimental import pallas as pl
from jax.experimental.pallas import tpu as pltpu


DCP = 128  # lane-dense padded output width (>= num_dcs, multiple of 128)


def gcn_kernel(a_ref, x_ref, mask_ref, w1_ref, w2_ref, wm_ref, bpack_ref, o_ref):
    """One graph-batch: a [N,N] bf16, x [N,F] bf16, mask [N,G] f32,
    w1 [F,H] bf16, w2 [H,H2] bf16, wm [H2,DCP] bf16, bpack [3,DCP] f32,
    o [G,DCP] f32."""
    H = w1_ref.shape[1]
    H2 = w2_ref.shape[1]
    G = mask_ref.shape[1]

    a = a_ref[...]                                       # [N, N] bf16
    x = x_ref[...]                                       # [N, F] bf16
    bp = bpack_ref[...]                                  # [3, DCP] f32
    b1 = bp[0:1, :H]                                     # [1, H]
    b2 = bp[1:2, :H2]                                    # [1, H2]
    bm = bp[2:3, :]                                      # [1, DCP]

    # conv1, reassociated: (A @ X) @ W1 + b1, relu   (F < H => cheaper order)
    ax = jnp.dot(a, x, preferred_element_type=jnp.float32)             # [N, F]
    h1 = jnp.dot(ax.astype(jnp.bfloat16), w1_ref[...],
                 preferred_element_type=jnp.float32)                   # [N, H]
    h1 = jnp.maximum(h1 + b1, 0.0)

    # conv2: A @ (H1 @ W2) + b2, relu   (H > H2 => this order is cheaper)
    hw = jnp.dot(h1.astype(jnp.bfloat16), w2_ref[...],
                 preferred_element_type=jnp.float32)                   # [N, H2]
    h2 = jnp.dot(a, hw.astype(jnp.bfloat16),
                 preferred_element_type=jnp.float32)                   # [N, H2]
    h2 = jnp.maximum(h2 + b2, 0.0)

    # global_max_pool over the `batch` assignment. Since h2 >= 0 after ReLU,
    # a 2-D multiply-mask followed by a sublane max equals the masked max
    # (nodes outside graph g contribute 0 <= any member's value); empty graphs
    # pool to 0 instead of a -1e30 sentinel. No [G, N, H2] rank-3 intermediate.
    mask = mask_ref[...]                                 # [N, G] f32 (0/1)
    pooled_rows = []
    for g in range(G):                                   # G is tiny & static
        mg = mask[:, g:g + 1]                            # [N, 1]
        pooled_rows.append(jnp.max(mg * h2, axis=0, keepdims=True))    # [1, H2]
    pooled = jnp.concatenate(pooled_rows, axis=0)        # [G, H2]

    # final Linear into a lane-dense padded output slab (unmasked vst).
    o_ref[...] = (jnp.dot(pooled.astype(jnp.bfloat16), wm_ref[...],
                          preferred_element_type=jnp.float32) + bm)    # [G, DCP]


def physnet_agg_demand_gcn(x, a_norm, node_mask, params):
    """Batched forward.

    x:         [B, N, F]  f32 node features (B independent graph-batches)
    a_norm:    [B, N, N]  f32 dense normalized adjacency per graph-batch
    node_mask: [B, N, G]  f32 one-hot node->graph membership per graph-batch
    params:    (w1 [F,H], b1 [H], w2 [H,H2], b2 [H2], wm [H2,num_dcs], bm [num_dcs])
    returns:   [B, G, num_dcs] f32
    """
    w1, b1, w2, b2, wm, bm = params
    B, N, F = x.shape
    G = node_mask.shape[2]
    H = w1.shape[1]
    H2 = w2.shape[1]
    num_dcs = wm.shape[1]

    # bf16 matmul operands (f32 accumulation inside the kernel).
    a_bf = a_norm.astype(jnp.bfloat16)
    x_bf = x.astype(jnp.bfloat16)
    w1_bf = w1.astype(jnp.bfloat16)
    w2_bf = w2.astype(jnp.bfloat16)
    wm_pad = jnp.zeros((H2, DCP), jnp.float32).at[:, :num_dcs].set(wm)
    wm_bf = wm_pad.astype(jnp.bfloat16)

    # Pack the three biases into one f32 buffer (fewer operands / tiny DMAs).
    bpack = jnp.zeros((3, DCP), jnp.float32)
    bpack = bpack.at[0, :H].set(b1)
    bpack = bpack.at[1, :H2].set(b2)
    bpack = bpack.at[2, :num_dcs].set(bm)

    out_pad = pl.pallas_call(
        gcn_kernel,
        out_shape=jax.ShapeDtypeStruct((B, G, DCP), jnp.float32),
        grid=(B,),
        in_specs=[
            pl.BlockSpec((None, N, N), lambda b: (b, 0, 0)),   # A_norm (per batch)
            pl.BlockSpec((None, N, F), lambda b: (b, 0, 0)),   # x      (per batch)
            pl.BlockSpec((None, N, G), lambda b: (b, 0, 0)),   # mask   (per batch)
            pl.BlockSpec((F, H), lambda b: (0, 0)),            # W1 (shared)
            pl.BlockSpec((H, H2), lambda b: (0, 0)),           # W2 (shared)
            pl.BlockSpec((H2, DCP), lambda b: (0, 0)),         # Wm (shared, padded)
            pl.BlockSpec((3, DCP), lambda b: (0, 0)),          # packed biases
        ],
        out_specs=pl.BlockSpec((None, G, DCP), lambda b: (b, 0, 0)),
        compiler_params=pltpu.CompilerParams(
            dimension_semantics=("parallel",)),
    )(a_bf, x_bf, node_mask, w1_bf, w2_bf, wm_bf, bpack)

    return out_pad[..., :num_dcs]


def gcn_norm_dense(edge_index, num_nodes):
    """Dense symmetric-normalized adjacency with self-loops (PyG gcn_norm)."""
    src = edge_index[0]
    dst = edge_index[1]
    loop = jnp.arange(num_nodes, dtype=src.dtype)
    src = jnp.concatenate([src, loop])
    dst = jnp.concatenate([dst, loop])
    deg = jnp.zeros((num_nodes,), jnp.float32).at[dst].add(1.0)   # in-degree at target
    dinv = jnp.where(deg > 0, jax.lax.rsqrt(deg), 0.0)
    norm = dinv[src] * dinv[dst]
    # aggregation: out[target] += norm * x[source]  =>  A[target, source] = norm
    a = jnp.zeros((num_nodes, num_nodes), jnp.float32).at[dst, src].add(norm)
    return a


def build_node_mask(batch, num_graphs):
    """[num_nodes, num_graphs] one-hot membership (node-major, no transpose in-kernel)."""
    return (batch[:, None] == jnp.arange(num_graphs)[None, :]).astype(jnp.float32)


def ref_forward(x, a, mask, w1, b1, w2, b2, wm, bm):
    """Pure-JAX f32 reference with the original op order (tolerance check)."""
    h1 = jnp.maximum(jnp.einsum('bnm,bmh->bnh', a, x @ w1) + b1, 0.0)
    h2 = jnp.maximum(jnp.einsum('bnm,bmh->bnh', a, h1 @ w2) + b2, 0.0)
    masked = jnp.where(mask[:, :, :, None] > 0, h2[:, :, None, :],
                       jnp.float32(-1e30))
    pooled = jnp.max(masked, axis=1)                              # [B, G, H2]
    return pooled @ wm + bm


if __name__ == "__main__":
    # Module hyperparameters (small, consistent with the PyTorch __init__).
    num_commodities = 4
    hidden_units = 32
    num_dcs = 4
    nodes_per_graph = 8
    num_graphs = 2
    num_nodes = num_graphs * nodes_per_graph          # 16
    num_batches = 4                                   # B graph-batches per call

    key = jax.random.PRNGKey(0)
    k_x, k_w1, k_w2, k_wm, k_bm = jax.random.split(key, 5)

    # Node features: demand vectors (inventories positive, demands negative).
    x = jax.random.normal(
        k_x, (num_batches, num_nodes, num_commodities), jnp.float32)

    # Deterministic synthetic graph: a bidirected ring within each graph.
    src_list, dst_list = [], []
    for g in range(num_graphs):
        base = g * nodes_per_graph
        for i in range(nodes_per_graph):
            u = base + i
            v = base + (i + 1) % nodes_per_graph
            src_list += [u, v]
            dst_list += [v, u]
    edge_index = jnp.array([src_list, dst_list], dtype=jnp.int32)   # [2, E]

    # batch assignment (node -> graph id), as in torch_geometric Data.batch
    batch = jnp.repeat(jnp.arange(num_graphs, dtype=jnp.int32), nodes_per_graph)

    # Parameters (GCNConv bias zero-init; Linear bias random).
    h2_units = hidden_units // 2
    w1 = jax.random.normal(k_w1, (num_commodities, hidden_units), jnp.float32) * 0.1
    b1 = jnp.zeros((hidden_units,), jnp.float32)
    w2 = jax.random.normal(k_w2, (hidden_units, h2_units), jnp.float32) * 0.1
    b2 = jnp.zeros((h2_units,), jnp.float32)
    wm = jax.random.normal(k_wm, (h2_units, num_dcs), jnp.float32) * 0.1
    bm = jax.random.normal(k_bm, (num_dcs,), jnp.float32) * 0.1

    # Glue: dense normalized adjacency + pooling mask, stacked over B batches
    # (same topology per batch here; the kernel supports per-batch graphs).
    a_single = gcn_norm_dense(edge_index, num_nodes)                 # [N, N]
    a_norm = jnp.tile(a_single[None], (num_batches, 1, 1))           # [B, N, N]
    mask_single = build_node_mask(batch, num_graphs)                 # [N, G]
    node_mask = jnp.tile(mask_single[None], (num_batches, 1, 1))     # [B, N, G]

    out = physnet_agg_demand_gcn(
        x, a_norm, node_mask, (w1, b1, w2, b2, wm, bm))
    out = jax.block_until_ready(out)

    assert out.shape == (num_batches, num_graphs, num_dcs)
    assert bool(jnp.all(jnp.isfinite(out)))

    # Loose tolerance vs f32 reference (kernel uses bf16 matmul operands and
    # reassociated conv1).
    ref = ref_forward(x, a_norm, node_mask, w1, b1, w2, b2, wm, bm)
    max_err = float(jnp.max(jnp.abs(out - ref)))
    assert max_err < 5e-2, f"max abs error vs reference: {max_err}"

    print("KERNEL_OK")
</pallas_src>

<mosaic_0001>
module attributes {stable_mosaic.version = 11 : i64} {
  func.func @gcn_kernel(%arg0: i32, %arg1: memref<1x16x16xbf16, #tpu.memory_space<vmem>>, %arg2: memref<1x16x4xbf16, #tpu.memory_space<vmem>>, %arg3: memref<1x16x2xf32, #tpu.memory_space<vmem>>, %arg4: memref<4x32xbf16, #tpu.memory_space<vmem>>, %arg5: memref<32x16xbf16, #tpu.memory_space<vmem>>, %arg6: memref<16x128xbf16, #tpu.memory_space<vmem>>, %arg7: memref<3x128xf32, #tpu.memory_space<vmem>>, %arg8: memref<1x2x128xf32, #tpu.memory_space<vmem>>) attributes {dimension_semantics = [#tpu.dimension_semantics<parallel>], iteration_bounds = array<i64: 4>, scalar_prefetch = 0 : i64, scratch_operands = 0 : i64, tpu.core_type = #tpu.core_type<tc>, window_params = [{transform_indices = @transform_0, window_bounds = array<i64: 1, 16, 16>}, {transform_indices = @transform_1, window_bounds = array<i64: 1, 16, 4>}, {transform_indices = @transform_2, window_bounds = array<i64: 1, 16, 2>}, {pipeline_mode = #tpu.pipeline_mode<synchronous>, transform_indices = @transform_3, window_bounds = array<i64: 4, 32>}, {pipeline_mode = #tpu.pipeline_mode<synchronous>, transform_indices = @transform_4, window_bounds = array<i64: 32, 16>}, {pipeline_mode = #tpu.pipeline_mode<synchronous>, transform_indices = @transform_5, window_bounds = array<i64: 16, 128>}, {pipeline_mode = #tpu.pipeline_mode<synchronous>, transform_indices = @transform_6, window_bounds = array<i64: 3, 128>}, {transform_indices = @transform_7, window_bounds = array<i64: 1, 2, 128>}]} {
    %c0 = arith.constant 0 : index
    %c0_0 = arith.constant 0 : index
    %c0_1 = arith.constant 0 : index
    %0 = vector.load %arg1[%c0, %c0_0, %c0_1] : memref<1x16x16xbf16, #tpu.memory_space<vmem>>, vector<1x16x16xbf16>
    %1 = vector.shape_cast %0 : vector<1x16x16xbf16> to vector<16x16xbf16>
    %c0_2 = arith.constant 0 : index
    %c0_3 = arith.constant 0 : index
    %c0_4 = arith.constant 0 : index
    %2 = vector.load %arg2[%c0_2, %c0_3, %c0_4] : memref<1x16x4xbf16, #tpu.memory_space<vmem>>, vector<1x16x4xbf16>
    %3 = vector.shape_cast %2 : vector<1x16x4xbf16> to vector<16x4xbf16>
    %c0_5 = arith.constant 0 : index
    %c0_6 = arith.constant 0 : index
    %4 = vector.load %arg7[%c0_5, %c0_6] : memref<3x128xf32, #tpu.memory_space<vmem>>, vector<3x128xf32>
    %5 = vector.extract_strided_slice %4 {offsets = [0, 0], sizes = [1, 32], strides = [1, 1]} : vector<3x128xf32> to vector<1x32xf32>
    %6 = vector.extract_strided_slice %4 {offsets = [1, 0], sizes = [1, 16], strides = [1, 1]} : vector<3x128xf32> to vector<1x16xf32>
    %7 = vector.extract_strided_slice %4 {offsets = [2, 0], sizes = [1, 128], strides = [1, 1]} : vector<3x128xf32> to vector<1x128xf32>
    %cst = arith.constant dense<0.000000e+00> : vector<16x4xf32>
    %8 = tpu.matmul %1, %3, %cst {dimension_numbers = #tpu.dot_dimension_numbers<[1], [0], [0], [1], [0, 0, 1, 1], [], []>} : vector<16x16xbf16>, vector<16x4xbf16>, vector<16x4xf32> -> vector<16x4xf32>
    %9 = arith.truncf %8 : vector<16x4xf32> to vector<16x4xbf16>
    %c0_7 = arith.constant 0 : index
    %c0_8 = arith.constant 0 : index
    %10 = vector.load %arg4[%c0_7, %c0_8] : memref<4x32xbf16, #tpu.memory_space<vmem>>, vector<4x32xbf16>
    %cst_9 = arith.constant dense<0.000000e+00> : vector<16x32xf32>
    %11 = tpu.matmul %9, %10, %cst_9 {dimension_numbers = #tpu.dot_dimension_numbers<[1], [0], [0], [1], [0, 0, 1, 1], [], []>} : vector<16x4xbf16>, vector<4x32xbf16>, vector<16x32xf32> -> vector<16x32xf32>
    %12 = vector.broadcast %5 : vector<1x32xf32> to vector<16x32xf32>
    %13 = arith.addf %11, %12 : vector<16x32xf32>
    %cst_10 = arith.constant 0.000000e+00 : f32
    %14 = vector.broadcast %cst_10 : f32 to vector<16x32xf32>
    %15 = arith.maximumf %13, %14 : vector<16x32xf32>
    %16 = arith.truncf %15 : vector<16x32xf32> to vector<16x32xbf16>
    %c0_11 = arith.constant 0 : index
    %c0_12 = arith.constant 0 : index
    %17 = vector.load %arg5[%c0_11, %c0_12] : memref<32x16xbf16, #tpu.memory_space<vmem>>, vector<32x16xbf16>
    %cst_13 = arith.constant dense<0.000000e+00> : vector<16x16xf32>
    %18 = tpu.matmul %16, %17, %cst_13 {dimension_numbers = #tpu.dot_dimension_numbers<[1], [0], [0], [1], [0, 0, 1, 1], [], []>} : vector<16x32xbf16>, vector<32x16xbf16>, vector<16x16xf32> -> vector<16x16xf32>
    %19 = arith.truncf %18 : vector<16x16xf32> to vector<16x16xbf16>
    %cst_14 = arith.constant dense<0.000000e+00> : vector<16x16xf32>
    %20 = tpu.matmul %1, %19, %cst_14 {dimension_numbers = #tpu.dot_dimension_numbers<[1], [0], [0], [1], [0, 0, 1, 1], [], []>} : vector<16x16xbf16>, vector<16x16xbf16>, vector<16x16xf32> -> vector<16x16xf32>
    %21 = vector.broadcast %6 : vector<1x16xf32> to vector<16x16xf32>
    %22 = arith.addf %20, %21 : vector<16x16xf32>
    %cst_15 = arith.constant 0.000000e+00 : f32
    %23 = vector.broadcast %cst_15 : f32 to vector<16x16xf32>
    %24 = arith.maximumf %22, %23 : vector<16x16xf32>
    %c0_16 = arith.constant 0 : index
    %c0_17 = arith.constant 0 : index
    %c0_18 = arith.constant 0 : index
    %25 = vector.load %arg3[%c0_16, %c0_17, %c0_18] : memref<1x16x2xf32, #tpu.memory_space<vmem>>, vector<1x16x2xf32>
    %26 = vector.shape_cast %25 : vector<1x16x2xf32> to vector<16x2xf32>
    %27 = vector.extract_strided_slice %26 {offsets = [0, 0], sizes = [16, 1], strides = [1, 1]} : vector<16x2xf32> to vector<16x1xf32>
    %28 = vector.broadcast %27 : vector<16x1xf32> to vector<16x16xf32>
    %29 = arith.mulf %28, %24 : vector<16x16xf32>
    %cst_19 = arith.constant dense<0xFF800000> : vector<16xf32>
    %30 = vector.multi_reduction <maximumf>, %29, %cst_19 [0] : vector<16x16xf32> to vector<16xf32>
    %31 = vector.shape_cast %30 : vector<16xf32> to vector<1x16xf32>
    %32 = vector.extract_strided_slice %26 {offsets = [0, 1], sizes = [16, 1], strides = [1, 1]} : vector<16x2xf32> to vector<16x1xf32>
    %33 = vector.broadcast %32 : vector<16x1xf32> to vector<16x16xf32>
    %34 = arith.mulf %33, %24 : vector<16x16xf32>
    %cst_20 = arith.constant dense<0xFF800000> : vector<16xf32>
    %35 = vector.multi_reduction <maximumf>, %34, %cst_20 [0] : vector<16x16xf32> to vector<16xf32>
    %36 = vector.shape_cast %35 : vector<16xf32> to vector<1x16xf32>
    %37 = tpu.concatenate %31, %36 in 0 : vector<1x16xf32>, vector<1x16xf32> -> vector<2x16xf32>
    %38 = arith.truncf %37 : vector<2x16xf32> to vector<2x16xbf16>
    %c0_21 = arith.constant 0 : index
    %c0_22 = arith.constant 0 : index
    %39 = vector.load %arg6[%c0_21, %c0_22] : memref<16x128xbf16, #tpu.memory_space<vmem>>, vector<16x128xbf16>
    %cst_23 = arith.constant dense<0.000000e+00> : vector<2x128xf32>
    %40 = tpu.matmul %38, %39, %cst_23 {dimension_numbers = #tpu.dot_dimension_numbers<[1], [0], [0], [1], [0, 0, 1, 1], [], []>} : vector<2x16xbf16>, vector<16x128xbf16>, vector<2x128xf32> -> vector<2x128xf32>
    %41 = vector.broadcast %7 : vector<1x128xf32> to vector<2x128xf32>
    %42 = arith.addf %40, %41 : vector<2x128xf32>
    %c0_24 = arith.constant 0 : index
    %c0_25 = arith.constant 0 : index
    %c0_26 = arith.constant 0 : index
    %43 = vector.load %arg8[%c0_24, %c0_25, %c0_26] : memref<1x2x128xf32, #tpu.memory_space<vmem>>, vector<1x2x128xf32>
    %44 = vector.shape_cast %43 : vector<1x2x128xf32> to vector<2x128xf32>
    %45 = vector.shape_cast %42 : vector<2x128xf32> to vector<1x2x128xf32>
    tpu.vector_store %arg8[%c0_24, %c0_25, %c0_26], %45 {strides = array<i32>} : memref<1x2x128xf32, #tpu.memory_space<vmem>>, vector<1x2x128xf32>,
    return
  }
  func.func @transform_0(%arg0: i32) -> (i32, i32, i32) {
    %c0_i32 = arith.constant 0 : i32
    %c0_i32_0 = arith.constant 0 : i32
    %c0_i32_1 = arith.constant 0 : i32
    return %arg0, %c0_i32, %c0_i32_0 : i32, i32, i32
  }
  func.func @transform_1(%arg0: i32) -> (i32, i32, i32) {
    %c0_i32 = arith.constant 0 : i32
    %c0_i32_0 = arith.constant 0 : i32
    %c0_i32_1 = arith.constant 0 : i32
    return %arg0, %c0_i32, %c0_i32_0 : i32, i32, i32
  }
  func.func @transform_2(%arg0: i32) -> (i32, i32, i32) {
    %c0_i32 = arith.constant 0 : i32
    %c0_i32_0 = arith.constant 0 : i32
    %c0_i32_1 = arith.constant 0 : i32
    return %arg0, %c0_i32, %c0_i32_0 : i32, i32, i32
  }
  func.func @transform_3(%arg0: i32) -> (i32, i32) {
    %c0_i32 = arith.constant 0 : i32
    %c0_i32_0 = arith.constant 0 : i32
    %c0_i32_1 = arith.constant 0 : i32
    return %c0_i32, %c0_i32_0 : i32, i32
  }
  func.func @transform_4(%arg0: i32) -> (i32, i32) {
    %c0_i32 = arith.constant 0 : i32
    %c0_i32_0 = arith.constant 0 : i32
    %c0_i32_1 = arith.constant 0 : i32
    return %c0_i32, %c0_i32_0 : i32, i32
  }
  func.func @transform_5(%arg0: i32) -> (i32, i32) {
    %c0_i32 = arith.constant 0 : i32
    %c0_i32_0 = arith.constant 0 : i32
    %c0_i32_1 = arith.constant 0 : i32
    return %c0_i32, %c0_i32_0 : i32, i32
  }
  func.func @transform_6(%arg0: i32) -> (i32, i32) {
    %c0_i32 = arith.constant 0 : i32
    %c0_i32_0 = arith.constant 0 : i32
    %c0_i32_1 = arith.constant 0 : i32
    return %c0_i32, %c0_i32_0 : i32, i32
  }
  func.func @transform_7(%arg0: i32) -> (i32, i32, i32) {
    %c0_i32 = arith.constant 0 : i32
    %c0_i32_0 = arith.constant 0 : i32
    %c0_i32_1 = arith.constant 0 : i32
    return %arg0, %c0_i32, %c0_i32_0 : i32, i32, i32
  }
}

</mosaic_0001>

<llo_original>
// kernel: tpu_custom_call.1
$region0: #{tpu_custom_call.1}
  #allocation0 [shape = 'u32[]', space=smem, size = 0x4, offset = 0x4, fixed_abs, tag = 'smem constant byte address 0x4 - core index']
  #allocation1 [shape = 'u32[144,128]{1,0:T(1,128)}', space=vmem, size = 0x12000, scoped, tag = 'internal scratch']
  %s0 = inlined_call_operand.vmem [shape: bf16[4,16,16], index: 0, kind: input, shape index: {}]
  %s1 = inlined_call_operand.vmem [shape: bf16[4,16,4], index: 1, kind: input, shape index: {}]
  %s2 = inlined_call_operand.vmem [shape: f32[4,16,2], index: 2, kind: input, shape index: {}]
  %s3 = inlined_call_operand.vmem [shape: bf16[4,32], index: 3, kind: input, shape index: {}]
  %s4 = inlined_call_operand.vmem [shape: bf16[32,16], index: 4, kind: input, shape index: {}]
  %s5 = inlined_call_operand.vmem [shape: bf16[16,128], index: 5, kind: input, shape index: {}]
  %s6 = inlined_call_operand.vmem [shape: f32[3,128], index: 6, kind: input, shape index: {}]
  %s7 = inlined_call_operand.hbm [shape: f32[4,2,128], index: 7, kind: output, shape index: {}]
  %s8 = sld [smem:[#allocation0]]
  $region61: #{tpu_custom_call.1} parent=0
    _
  %s10 = ssub.s32 1, %s8
  %s11 = scalar_select 0, %s10, %s8
  $region1: #{tpu_custom_call.1} parent=0
    #allocation2 [shape = 'u8[2048]{0}', space=vmem, size = 0x800, scoped, tag = 'output window, operand 0']
    #allocation3 [shape = 's32[2]{0}', space=sflag, size = 0x8, scoped, tag = 'scoped memory for tpu_custom_call.1']
    %12 = vsyncpa [#allocation3], 0
    %s13 = scalar_lea.sflag [#allocation3], 1
    %14 = vsyncpa %s13, 0
    loop: start=0, step=1, limit=6
    $region2: #{tpu_custom_call.1} parent=1 // loop_pre_header
      _
    $region3: #{tpu_custom_call.1} parent=1 // loop_header
      %s16 = sphi 0, %s20
      %p17 = scmp.ge.s32.totalorder %s16, 6
      %s26 = sphi 0, %s28
      %s29 = sphi 0, %s26
      %s30 = sphi 0, %s29
      %s46 = sphi 0, %s30
      %s52 = sphi 0, %s54
      %s55 = sphi 0, %s52
      %s56 = sphi 0, %s55
      %s72 = sphi 0, %s56
      %s78 = sphi 0, %s80
      %s81 = sphi 0, %s78
      %s82 = sphi 0, %s81
      %s98 = sphi 0, %s82
      %s102 = sphi 0, %s102
      %s104 = sphi 0, %s102
      %s105 = sphi 0, %s104
      %s119 = sphi 0, %s105
      %s123 = sphi 0, %s123
      %s125 = sphi 0, %s123
      %s126 = sphi 0, %s125
      %s140 = sphi 0, %s126
      %s144 = sphi 0, %s144
      %s146 = sphi 0, %s144
      %s147 = sphi 0, %s146
      %s161 = sphi 0, %s147
      %s165 = sphi 0, %s165
      %s167 = sphi 0, %s165
      %s168 = sphi 0, %s167
      %s182 = sphi 0, %s168
      %s188 = sphi 0, %s190
      %s191 = sphi 0, %s188
      %s192 = sphi 0, %s191
      %s208 = sphi 0, %s192
    $region4: #{tpu_custom_call.1} parent=1 // loop_header_branch
      %19 = sbr.rel (%p17) target = $region8
    $region5: #{tpu_custom_call.1} parent=1 // loop_body
      %s21 = ssub.s32 %s16, 1
      %s22 = ssub.s32 %s16, 2
      %s23 = sadd.s32 %s16, 1
      %s24 = ssub.s32 %s16, %s23
      %p25 = scmp.eq.s32.totalorder %s24, 0
      %s27 = sadd.s32 %s26, 1
      %s28 = scalar_select %p25, %s26, %s27
      %p31 = pneg %p25
      %p32 = scmp.eq.s32.totalorder %s16, 3
      %p33 = por %p31, %p32
      %p34 = scmp.ne.s32.totalorder %s26, %s29
      %p35 = scmp.eq.s32.totalorder %s16, 0
      %p36 = por %p34, %p35
      %p37 = scmp.ne.s32.totalorder %s26, %s29
      %p38 = scmp.eq.s32.totalorder %s21, 3
      %p39 = por %p37, %p38
      %p40 = scmp.ne.s32.totalorder %s29, %s30
      %p41 = scmp.eq.s32.totalorder %s21, 0
      %p42 = por %p40, %p41
      %p43 = scmp.ne.s32.totalorder %s29, %s30
      %p44 = scmp.eq.s32.totalorder %s22, 3
      %p45 = por %p43, %p44
      %p47 = scmp.ne.s32.totalorder %s30, %s46
      %p48 = scmp.eq.s32.totalorder %s22, 0
      %p49 = por %p47, %p48
      %s50 = ssub.s32 %s16, %s23
      %p51 = scmp.eq.s32.totalorder %s50, 0
      %s53 = sadd.s32 %s52, 1
      %s54 = scalar_select %p51, %s52, %s53
      %p57 = pneg %p51
      %p58 = scmp.eq.s32.totalorder %s16, 3
      %p59 = por %p57, %p58
      %p60 = scmp.ne.s32.totalorder %s52, %s55
      %p61 = scmp.eq.s32.totalorder %s16, 0
      %p62 = por %p60, %p61
      %p63 = scmp.ne.s32.totalorder %s52, %s55
      %p64 = scmp.eq.s32.totalorder %s21, 3
      %p65 = por %p63, %p64
      %p66 = scmp.ne.s32.totalorder %s55, %s56
      %p67 = scmp.eq.s32.totalorder %s21, 0
      %p68 = por %p66, %p67
      %p69 = scmp.ne.s32.totalorder %s55, %s56
      %p70 = scmp.eq.s32.totalorder %s22, 3
      %p71 = por %p69, %p70
      %p73 = scmp.ne.s32.totalorder %s56, %s72
      %p74 = scmp.eq.s32.totalorder %s22, 0
      %p75 = por %p73, %p74
      %s76 = ssub.s32 %s16, %s23
      %p77 = scmp.eq.s32.totalorder %s76, 0
      %s79 = sadd.s32 %s78, 1
      %s80 = scalar_select %p77, %s78, %s79
      %p83 = pneg %p77
      %p84 = scmp.eq.s32.totalorder %s16, 3
      %p85 = por %p83, %p84
      %p86 = scmp.ne.s32.totalorder %s78, %s81
      %p87 = scmp.eq.s32.totalorder %s16, 0
      %p88 = por %p86, %p87
      %p89 = scmp.ne.s32.totalorder %s78, %s81
      %p90 = scmp.eq.s32.totalorder %s21, 3
      %p91 = por %p89, %p90
      %p92 = scmp.ne.s32.totalorder %s81, %s82
      %p93 = scmp.eq.s32.totalorder %s21, 0
      %p94 = por %p92, %p93
      %p95 = scmp.ne.s32.totalorder %s81, %s82
      %p96 = scmp.eq.s32.totalorder %s22, 3
      %p97 = por %p95, %p96
      %p99 = scmp.ne.s32.totalorder %s82, %s98
      %p100 = scmp.eq.s32.totalorder %s22, 0
      %p101 = por %p99, %p100
      %s103 = sadd.s32 %s102, 1
      %p106 = scmp.eq.s32.totalorder %s16, 3
      %p107 = scmp.ne.s32.totalorder %s102, %s104
      %p108 = scmp.eq.s32.totalorder %s16, 0
      %p109 = por %p107, %p108
      %p110 = scmp.ne.s32.totalorder %s102, %s104
      %p111 = scmp.eq.s32.totalorder %s21, 3
      %p112 = por %p110, %p111
      %p113 = scmp.ne.s32.totalorder %s104, %s105
      %p114 = scmp.eq.s32.totalorder %s21, 0
      %p115 = por %p113, %p114
      %p116 = scmp.ne.s32.totalorder %s104, %s105
      %p117 = scmp.eq.s32.totalorder %s22, 3
      %p118 = por %p116, %p117
      %p120 = scmp.ne.s32.totalorder %s105, %s119
      %p121 = scmp.eq.s32.totalorder %s22, 0
      %p122 = por %p120, %p121
      %s124 = sadd.s32 %s123, 1
      %p127 = scmp.eq.s32.totalorder %s16, 3
      %p128 = scmp.ne.s32.totalorder %s123, %s125
      %p129 = scmp.eq.s32.totalorder %s16, 0
      %p130 = por %p128, %p129
      %p131 = scmp.ne.s32.totalorder %s123, %s125
      %p132 = scmp.eq.s32.totalorder %s21, 3
      %p133 = por %p131, %p132
      %p134 = scmp.ne.s32.totalorder %s125, %s126
      %p135 = scmp.eq.s32.totalorder %s21, 0
      %p136 = por %p134, %p135
      %p137 = scmp.ne.s32.totalorder %s125, %s126
      %p138 = scmp.eq.s32.totalorder %s22, 3
      %p139 = por %p137, %p138
      %p141 = scmp.ne.s32.totalorder %s126, %s140
      %p142 = scmp.eq.s32.totalorder %s22, 0
      %p143 = por %p141, %p142
      %s145 = sadd.s32 %s144, 1
      %p148 = scmp.eq.s32.totalorder %s16, 3
      %p149 = scmp.ne.s32.totalorder %s144, %s146
      %p150 = scmp.eq.s32.totalorder %s16, 0
      %p151 = por %p149, %p150
      %p152 = scmp.ne.s32.totalorder %s144, %s146
      %p153 = scmp.eq.s32.totalorder %s21, 3
      %p154 = por %p152, %p153
      %p155 = scmp.ne.s32.totalorder %s146, %s147
      %p156 = scmp.eq.s32.totalorder %s21, 0
      %p157 = por %p155, %p156
      %p158 = scmp.ne.s32.totalorder %s146, %s147
      %p159 = scmp.eq.s32.totalorder %s22, 3
      %p160 = por %p158, %p159
      %p162 = scmp.ne.s32.totalorder %s147, %s161
      %p163 = scmp.eq.s32.totalorder %s22, 0
      %p164 = por %p162, %p163
      %s166 = sadd.s32 %s165, 1
      %p169 = scmp.eq.s32.totalorder %s16, 3
      %p170 = scmp.ne.s32.totalorder %s165, %s167
      %p171 = scmp.eq.s32.totalorder %s16, 0
      %p172 = por %p170, %p171
      %p173 = scmp.ne.s32.totalorder %s165, %s167
      %p174 = scmp.eq.s32.totalorder %s21, 3
      %p175 = por %p173, %p174
      %p176 = scmp.ne.s32.totalorder %s167, %s168
      %p177 = scmp.eq.s32.totalorder %s21, 0
      %p178 = por %p176, %p177
      %p179 = scmp.ne.s32.totalorder %s167, %s168
      %p180 = scmp.eq.s32.totalorder %s22, 3
      %p181 = por %p179, %p180
      %p183 = scmp.ne.s32.totalorder %s168, %s182
      %p184 = scmp.eq.s32.totalorder %s22, 0
      %p185 = por %p183, %p184
      %s186 = ssub.s32 %s16, %s23
      %p187 = scmp.eq.s32.totalorder %s186, 0
      %s189 = sadd.s32 %s188, 1
      %s190 = scalar_select %p187, %s188, %s189
      %p193 = pneg %p187
      %p194 = scmp.eq.s32.totalorder %s16, 3
      %p195 = por %p193, %p194
      %p196 = scmp.ne.s32.totalorder %s188, %s191
      %p197 = scmp.eq.s32.totalorder %s16, 0
      %p198 = por %p196, %p197
      %p199 = scmp.ne.s32.totalorder %s188, %s191
      %p200 = scmp.eq.s32.totalorder %s21, 3
      %p201 = por %p199, %p200
      %p202 = scmp.ne.s32.totalorder %s191, %s192
      %p203 = scmp.eq.s32.totalorder %s21, 0
      %p204 = por %p202, %p203
      %p205 = scmp.ne.s32.totalorder %s191, %s192
      %p206 = scmp.eq.s32.totalorder %s22, 3
      %p207 = por %p205, %p206
      %p209 = scmp.ne.s32.totalorder %s192, %s208
      %p210 = scmp.eq.s32.totalorder %s22, 0
      %p211 = por %p209, %p210
      %p212 = scmp.le.s32.totalorder 1, %s16
      %p213 = scmp.lt.s32.totalorder %s16, 5
      %p214 = pnand %p212, %p213
      %p215 = pneg %p214
      // Predicated region
      $region9: #{tpu_custom_call.1} parent=5 // pred_check
        _
      $region10: #{tpu_custom_call.1} parent=5 // pred_check_branch
        %217 = sbr.rel (%p214) target = $region12
      $region11: #{tpu_custom_call.1} parent=5 // pred_region
        %s218 = ssub.s32 %s16, 1
        // Predicated region
        $region13: #{tpu_custom_call.1} parent=11 // pred_check
          %p219 = pneg %p115
        $region14: #{tpu_custom_call.1} parent=11 // pred_check_branch
          %221 = sbr.rel (%p219) target = $region16
        $region15: #{tpu_custom_call.1} parent=11 // pred_region
          _
        $region16: #{tpu_custom_call.1} parent=11 // pred_fallthru
          _
        // Predicated region
        $region17: #{tpu_custom_call.1} parent=11 // pred_check
          %p222 = pneg %p136
        $region18: #{tpu_custom_call.1} parent=11 // pred_check_branch
          %224 = sbr.rel (%p222) target = $region20
        $region19: #{tpu_custom_call.1} parent=11 // pred_region
          _
        $region20: #{tpu_custom_call.1} parent=11 // pred_fallthru
          _
        // Predicated region
        $region21: #{tpu_custom_call.1} parent=11 // pred_check
          %p225 = pneg %p157
        $region22: #{tpu_custom_call.1} parent=11 // pred_check_branch
          %227 = sbr.rel (%p225) target = $region24
        $region23: #{tpu_custom_call.1} parent=11 // pred_region
          _
        $region24: #{tpu_custom_call.1} parent=11 // pred_fallthru
          _
        // Predicated region
        $region25: #{tpu_custom_call.1} parent=11 // pred_check
          %p228 = pneg %p178
        $region26: #{tpu_custom_call.1} parent=11 // pred_check_branch
          %230 = sbr.rel (%p228) target = $region28
        $region27: #{tpu_custom_call.1} parent=11 // pred_region
          _
        $region28: #{tpu_custom_call.1} parent=11 // pred_fallthru
          _
      $region12: #{tpu_custom_call.1} parent=5 // pred_fallthru
        _
      %p231 = scmp.lt.s32.totalorder %s16, 4
      // Predicated region
      $region29: #{tpu_custom_call.1} parent=5 // pred_check
        %p232 = pneg %p231
      $region30: #{tpu_custom_call.1} parent=5 // pred_check_branch
        %234 = sbr.rel (%p232) target = $region32
      $region31: #{tpu_custom_call.1} parent=5 // pred_region
        // Predicated region
        $region33: #{tpu_custom_call.1} parent=31 // pred_check
          %p235 = pneg %p36
        $region34: #{tpu_custom_call.1} parent=31 // pred_check_branch
          %237 = sbr.rel (%p235) target = $region36
        $region35: #{tpu_custom_call.1} parent=31 // pred_region
          %p238 = scmp.lt.s32.totalorder %s16, 3
          %s239 = scalar_select %p238, %s16, 3
          %s240 = smul.addr %s239, 2
          %s241 = smul.addr %s240, 4
          %s242 = scalar_lea.vmem %s0, %s241
        $region36: #{tpu_custom_call.1} parent=31 // pred_fallthru
          _
        // Predicated region
        $region37: #{tpu_custom_call.1} parent=31 // pred_check
          %p243 = pneg %p62
        $region38: #{tpu_custom_call.1} parent=31 // pred_check_branch
          %245 = sbr.rel (%p243) target = $region40
        $region39: #{tpu_custom_call.1} parent=31 // pred_region
          %p246 = scmp.lt.s32.totalorder %s16, 3
          %s247 = scalar_select %p246, %s16, 3
          %s248 = smul.addr %s247, 2
          %s249 = smul.addr %s248, 4
          %s250 = scalar_lea.vmem %s1, %s249
        $region40: #{tpu_custom_call.1} parent=31 // pred_fallthru
          _
        // Predicated region
        $region41: #{tpu_custom_call.1} parent=31 // pred_check
          %p251 = pneg %p88
        $region42: #{tpu_custom_call.1} parent=31 // pred_check_branch
          %253 = sbr.rel (%p251) target = $region44
        $region43: #{tpu_custom_call.1} parent=31 // pred_region
          %p254 = scmp.lt.s32.totalorder %s16, 3
          %s255 = scalar_select %p254, %s16, 3
          %s256 = smul.addr %s255, 2
          %s257 = smul.addr %s256, 8
          %s258 = scalar_lea.vmem %s2, %s257
        $region44: #{tpu_custom_call.1} parent=31 // pred_fallthru
          _
      $region32: #{tpu_custom_call.1} parent=5 // pred_fallthru
        _
      %p259 = scmp.le.s32.totalorder 1, %s16
      %p260 = scmp.lt.s32.totalorder %s16, 5
      %p261 = pnand %p259, %p260
      %p262 = pneg %p261
      // Predicated region
      $region45: #{tpu_custom_call.1} parent=5 // pred_check
        _
      $region46: #{tpu_custom_call.1} parent=5 // pred_check_branch
        %264 = sbr.rel (%p261) target = $region48
      $region47: #{tpu_custom_call.1} parent=5 // pred_region
        %s265 = ssub.s32 %s16, 1
        %p266 = scmp.lt.s32.totalorder %s21, 3
        %s267 = scalar_select %p266, %s21, 3
        %s268 = smul.addr %s267, 2
        %s269 = smul.addr %s268, 4
        %s270 = scalar_lea.vmem %s0, %s269
        %p271 = pneg %p42
        %p272 = pneg %p39
        %p273 = scmp.lt.s32.totalorder %s21, 3
        %s274 = scalar_select %p273, %s21, 3
        %s275 = smul.addr %s274, 2
        %s276 = smul.addr %s275, 4
        %s277 = scalar_lea.vmem %s1, %s276
        %p278 = pneg %p68
        %p279 = pneg %p65
        %p280 = scmp.lt.s32.totalorder %s21, 3
        %s281 = scalar_select %p280, %s21, 3
        %s282 = smul.addr %s281, 2
        %s283 = smul.addr %s282, 8
        %s284 = scalar_lea.vmem %s2, %s283
        %p285 = pneg %p94
        %p286 = pneg %p91
        %p287 = pneg %p115
        %p288 = pneg %p112
        %p289 = pneg %p136
        %p290 = pneg %p133
        %p291 = pneg %p157
        %p292 = pneg %p154
        %p293 = pneg %p178
        %p294 = pneg %p175
        %p295 = pneg %p204
        %p296 = pneg %p201
        %s297 = sand.u32 %s191, 1
        %s298 = scalar_lea.sflag [#allocation3], %s297
        %s299 = sand.u32 %s191, 1
        %s300 = smul.addr %s299, 2
        %s301 = scalar_lea.vmem [#allocation2], %s300
        %p302 = scmp.lt.s32.totalorder %s21, 3
        %s303 = scalar_select %p302, %s21, 3
        %s304 = smul.addr %s303, 2
        %s305 = smul.addr %s304, 4
        %s306 = scalar_lea.vmem %s0, %s305
        %p307 = scmp.lt.s32.totalorder %s21, 3
        %s308 = scalar_select %p307, %s21, 3
        %s309 = smul.addr %s308, 2
        %s310 = smul.addr %s309, 4
        %s311 = scalar_lea.vmem %s1, %s310
        %p312 = scmp.lt.s32.totalorder %s21, 3
        %s313 = scalar_select %p312, %s21, 3
        %s314 = smul.addr %s313, 2
        %s315 = smul.addr %s314, 8
        %s316 = scalar_lea.vmem %s2, %s315
        %v318 = vld [vmem:[%s306] sm:$0xf]
        %v319 = vld [vmem:[%s306 + $0x4] sm:$0xf]
        %v320 = vld [vmem:[%s311] sm:$0xf]
        %v321 = vld [vmem:[%s311 + $0x4] sm:$0xf]
        %v322 = vld [vmem:[%s6] sm:$0x7]
        %v325 = vunpack.c.l.b16 %v318
        %v326 = vunpack.c.l.b16 %v319
        %v327 = vpack.c.b16 %v326, %v325
        %v330 = vunpack.c.l.b16 %v320
        %v331 = vunpack.c.l.b16 %v321
        %v332 = vpack.c.b16 %v331, %v330
        %vm334 = vcmask 130048
        %v336 = vsel %vm334, %v327, 0
        %338 = vmatprep.subr.bf16.mxu0 0
        %339 = vmatpush1.bf16.msra.mxu0 %v332
        %340 = vmatprep.subr.bf16.mxu0 0
        %341 = vmatpush1.bf16.msra.mxu0 0
        %342 = vmatprep.subr.bf16.mxu0 0
        %343 = vmatpush1.bf16.msra.mxu0 0
        %344 = vmatprep.subr.bf16.mxu0 0
        %345 = vmatpush1.bf16.msra.mxu0 0
        %346 = vmatprep.subr.bf16.mxu0 0
        %347 = vmatpush1.bf16.msra.mxu0 0
        %348 = vmatprep.subr.bf16.mxu0 0
        %349 = vmatpush1.bf16.msra.mxu0 0
        %350 = vmatprep.subr.bf16.mxu0 0
        %351 = vmatpush1.bf16.msra.mxu0 0
        %352 = vmatprep.subr.bf16.mxu0 0
        %353 = vmatpush1.bf16.msra.mxu0 0
        %354 = vmatprep.subr.bf16.mxu0 0
        %355 = vmatpush1.bf16.msra.mxu0 0
        %356 = vmatprep.subr.bf16.mxu0 0
        %357 = vmatpush1.bf16.msra.mxu0 0
        %358 = vmatprep.subr.bf16.mxu0 0
        %359 = vmatpush1.bf16.msra.mxu0 0
        %360 = vmatprep.subr.bf16.mxu0 0
        %361 = vmatpush1.bf16.msra.mxu0 0
        %362 = vmatprep.subr.bf16.mxu0 0
        %363 = vmatpush1.bf16.msra.mxu0 0
        %364 = vmatprep.subr.bf16.mxu0 0
        %365 = vmatpush1.bf16.msra.mxu0 0
        %366 = vmatprep.subr.bf16.mxu0 0
        %367 = vmatpush1.bf16.msra.mxu0 0
        %368 = vmatprep.subr.bf16.mxu0 0
        %369 = vmatpush1.bf16.msra.mxu0 0
        %370 = vmatprep.mubr.bf16.mxu0 0
        %371 = vmatmul.mubr.bf16.gmra.mrb[0].mxu0 %v336
        %v372 = vpop.f32.mrb[0].mxu0
        %v373 = vadd.f32 0.0, %v372
        %v374 = vpop.f32.mrb[0].mxu0
        %v375 = vpop.f32.mrb[0].mxu0
        %v376 = vadd.f32 0.0, %v375
        %v377 = vpop.f32.mrb[0].mxu0
        %378 = vdwg.mxu0
        %v379 = vpack.c.bf16 %v376, %v373
        %v380 = vld [vmem:[%s3] sm:$0x3]
        %v381 = vlaneseq
        %v382 = vshrl.u32 %v381, 7
        %v383 = vsub.s32 0, %v382
        %v384 = vrot.slane %v322, %v383
        %vm385 = vcmask 31744
        %v387 = vsel %vm385, %v379, 0
        %vm389 = vcmask 1041408
        %v391 = vsel %vm389, %v380, 0
        %393 = vmatprep.subr.bf16.mxu0 0
        %394 = vmatpush1.bf16.msra.mxu0 %v391
        %395 = vmatprep.subr.bf16.mxu0 0
        %396 = vmatpush1.bf16.msra.mxu0 0
        %397 = vmatprep.subr.bf16.mxu0 0
        %398 = vmatpush1.bf16.msra.mxu0 0
        %399 = vmatprep.subr.bf16.mxu0 0
        %400 = vmatpush1.bf16.msra.mxu0 0
        %401 = vmatprep.subr.bf16.mxu0 0
        %402 = vmatpush1.bf16.msra.mxu0 0
        %403 = vmatprep.subr.bf16.mxu0 0
        %404 = vmatpush1.bf16.msra.mxu0 0
        %405 = vmatprep.subr.bf16.mxu0 0
        %406 = vmatpush1.bf16.msra.mxu0 0
        %407 = vmatprep.subr.bf16.mxu0 0
        %408 = vmatpush1.bf16.msra.mxu0 0
        %409 = vmatprep.subr.bf16.mxu0 0
        %410 = vmatpush1.bf16.msra.mxu0 0
        %411 = vmatprep.subr.bf16.mxu0 0
        %412 = vmatpush1.bf16.msra.mxu0 0
        %413 = vmatprep.subr.bf16.mxu0 0
        %414 = vmatpush1.bf16.msra.mxu0 0
        %415 = vmatprep.subr.bf16.mxu0 0
        %416 = vmatpush1.bf16.msra.mxu0 0
        %417 = vmatprep.subr.bf16.mxu0 0
        %418 = vmatpush1.bf16.msra.mxu0 0
        %419 = vmatprep.subr.bf16.mxu0 0
        %420 = vmatpush1.bf16.msra.mxu0 0
        %421 = vmatprep.subr.bf16.mxu0 0
        %422 = vmatpush1.bf16.msra.mxu0 0
        %423 = vmatprep.subr.bf16.mxu0 0
        %424 = vmatpush1.bf16.msra.mxu0 0
        %425 = vmatprep.mubr.bf16.mxu0 0
        %426 = vmatmul.mubr.bf16.gmra.mrb[0].mxu0 %v387
        %v427 = vpop.f32.mrb[0].mxu0
        %v428 = vadd.f32 %v384, %v427
        %v429 = vpop.f32.mrb[0].mxu0
        %v430 = vpop.f32.mrb[0].mxu0
        %v431 = vadd.f32 %v384, %v430
        %v432 = vpop.f32.mrb[0].mxu0
        %433 = vdwg.mxu0
        %v434 = vmax.f32 %v428, 0.0
        %v435 = vmax.f32 %v431, 0.0
        %v436 = vpack.c.bf16 %v435, %v434
        %v437 = vld [vmem:[%s4] sm:$0xf]
        %v438 = vld [vmem:[%s4 + $0x4] sm:$0xf]
        %v439 = vld [vmem:[%s4 + $0x8] sm:$0xf]
        %v440 = vld [vmem:[%s4 + $0xc] sm:$0xf]
        %v445 = vunpack.c.l.b16 %v437
        %v446 = vunpack.c.l.b16 %v438
        %v447 = vunpack.c.l.b16 %v439
        %v448 = vunpack.c.l.b16 %v440
        %v449 = vpack.c.b16 %v446, %v445
        %v450 = vpack.c.b16 %v448, %v447
        %vm453 = vcmask 261120
        %v455 = vsel %vm453, %v436, 0
        %457 = vmatprep.subr.bf16.mxu0 0
        %458 = vmatpush1.bf16.msra.mxu0 %v449
        %459 = vmatprep.subr.bf16.mxu0 0
        %460 = vmatpush1.bf16.msra.mxu0 %v450
        %461 = vmatprep.subr.bf16.mxu0 0
        %462 = vmatpush1.bf16.msra.mxu0 0
        %463 = vmatprep.subr.bf16.mxu0 0
        %464 = vmatpush1.bf16.msra.mxu0 0
        %465 = vmatprep.subr.bf16.mxu0 0
        %466 = vmatpush1.bf16.msra.mxu0 0
        %467 = vmatprep.subr.bf16.mxu0 0
        %468 = vmatpush1.bf16.msra.mxu0 0
        %469 = vmatprep.subr.bf16.mxu0 0
        %470 = vmatpush1.bf16.msra.mxu0 0
        %471 = vmatprep.subr.bf16.mxu0 0
        %472 = vmatpush1.bf16.msra.mxu0 0
        %473 = vmatprep.subr.bf16.mxu0 0
        %474 = vmatpush1.bf16.msra.mxu0 0
        %475 = vmatprep.subr.bf16.mxu0 0
        %476 = vmatpush1.bf16.msra.mxu0 0
        %477 = vmatprep.subr.bf16.mxu0 0
        %478 = vmatpush1.bf16.msra.mxu0 0
        %479 = vmatprep.subr.bf16.mxu0 0
        %480 = vmatpush1.bf16.msra.mxu0 0
        %481 = vmatprep.subr.bf16.mxu0 0
        %482 = vmatpush1.bf16.msra.mxu0 0
        %483 = vmatprep.subr.bf16.mxu0 0
        %484 = vmatpush1.bf16.msra.mxu0 0
        %485 = vmatprep.subr.bf16.mxu0 0
        %486 = vmatpush1.bf16.msra.mxu0 0
        %487 = vmatprep.subr.bf16.mxu0 0
        %488 = vmatpush1.bf16.msra.mxu0 0
        %489 = vmatprep.mubr.bf16.mxu0 0
        %490 = vmatmul.mubr.bf16.gmra.mrb[0].mxu0 %v455
        %v491 = vpop.f32.mrb[0].mxu0
        %v492 = vadd.f32 0.0, %v491
        %v493 = vpop.f32.mrb[0].mxu0
        %v494 = vpop.f32.mrb[0].mxu0
        %v495 = vadd.f32 0.0, %v494
        %v496 = vpop.f32.mrb[0].mxu0
        %497 = vdwg.mxu0
        %v498 = vpack.c.bf16 %v495, %v492
        %v499 = vlaneseq
        %v500 = vshrl.u32 %v499, 7
        %v501 = vsub.s32 1, %v500
        %v502 = vrot.slane %v322, %v501
        %503 = vmatprep.subr.bf16.mxu0 0
        %504 = vmatpush1.bf16.msra.mxu0 %v498
        %505 = vmatprep.subr.bf16.mxu0 0
        %506 = vmatpush1.bf16.msra.mxu0 0
        %507 = vmatprep.subr.bf16.mxu0 0
        %508 = vmatpush1.bf16.msra.mxu0 0
        %509 = vmatprep.subr.bf16.mxu0 0
        %510 = vmatpush1.bf16.msra.mxu0 0
        %511 = vmatprep.subr.bf16.mxu0 0
        %512 = vmatpush1.bf16.msra.mxu0 0
        %513 = vmatprep.subr.bf16.mxu0 0
        %514 = vmatpush1.bf16.msra.mxu0 0
        %515 = vmatprep.subr.bf16.mxu0 0
        %516 = vmatpush1.bf16.msra.mxu0 0
        %517 = vmatprep.subr.bf16.mxu0 0
        %518 = vmatpush1.bf16.msra.mxu0 0
        %519 = vmatprep.subr.bf16.mxu0 0
        %520 = vmatpush1.bf16.msra.mxu0 0
        %521 = vmatprep.subr.bf16.mxu0 0
        %522 = vmatpush1.bf16.msra.mxu0 0
        %523 = vmatprep.subr.bf16.mxu0 0
        %524 = vmatpush1.bf16.msra.mxu0 0
        %525 = vmatprep.subr.bf16.mxu0 0
        %526 = vmatpush1.bf16.msra.mxu0 0
        %527 = vmatprep.subr.bf16.mxu0 0
        %528 = vmatpush1.bf16.msra.mxu0 0
        %529 = vmatprep.subr.bf16.mxu0 0
        %530 = vmatpush1.bf16.msra.mxu0 0
        %531 = vmatprep.subr.bf16.mxu0 0
        %532 = vmatpush1.bf16.msra.mxu0 0
        %533 = vmatprep.subr.bf16.mxu0 0
        %534 = vmatpush1.bf16.msra.mxu0 0
        %535 = vmatprep.mubr.bf16.mxu0 0
        %536 = vmatmul.mubr.bf16.gmra.mrb[0].mxu0 %v336
        %v537 = vpop.f32.mrb[0].mxu0
        %v538 = vadd.f32 %v502, %v537
        %v539 = vpop.f32.mrb[0].mxu0
        %v540 = vpop.f32.mrb[0].mxu0
        %v541 = vadd.f32 %v502, %v540
        %v542 = vpop.f32.mrb[0].mxu0
        %543 = vdwg.mxu0
        %v544 = vmax.f32 %v538, 0.0
        %v545 = vmax.f32 %v541, 0.0
        %v546 = vld [vmem:[%s316] sm:$0xff]
        %v547 = vld [vmem:[%s316 + $0x8] sm:$0xff]
        %549 = vset.pattern.permute.xlu0 0
        %550 = vperm.xlu0 %549, %v546
        %v551 = vpop.permute.xlu0 %550
        %554 = vset.pattern.permute.xlu0 0
        %555 = vperm.xlu0 %554, %v547
        %v556 = vpop.permute.xlu0 %555
        %v558 = vmul.f32 %v551, %v544
        %v559 = vmul.f32 %v556, %v545
        %v560 = vsel %vm334, %v558, -inf
        %v561 = vsel %vm334, %v559, -inf
        %v562 = vmax.f32 %v560, %v561
        %v563 = vrot.slane %v562, 4
        %v564 = vmax.f32 %v562, %v563
        %v565 = vrot.slane %v564, 2
        %v566 = vmax.f32 %v564, %v565
        %v567 = vrot.slane %v566, 1
        %v568 = vmax.f32 %v566, %v567
        %569 = vset.pattern.permute.xlu0 1
        %570 = vperm.xlu0 %569, %v546
        %v571 = vpop.permute.xlu0 %570
        %573 = vset.pattern.permute.xlu0 1
        %574 = vperm.xlu0 %573, %v547
        %v575 = vpop.permute.xlu0 %574
        %v577 = vmul.f32 %v571, %v544
        %v578 = vmul.f32 %v575, %v545
        %v579 = vsel %vm334, %v577, -inf
        %v580 = vsel %vm334, %v578, -inf
        %v581 = vmax.f32 %v579, %v580
        %v582 = vrot.slane %v581, 4
        %v583 = vmax.f32 %v581, %v582
        %v584 = vrot.slane %v583, 2
        %v585 = vmax.f32 %v583, %v584
        %v586 = vrot.slane %v585, 1
        %v587 = vmax.f32 %v585, %v586
        %vm588 = vcmask 1040384
        %v589 = vsel %vm588, %v568, %v587
        %v590 = vpack.c.bf16 %v589, %v589
        %v591 = vld [vmem:[%s5] sm:$0xf]
        %v592 = vld [vmem:[%s5 + $0x4] sm:$0xf]
        %v593 = vlaneseq
        %v594 = vshrl.u32 %v593, 7
        %v595 = vsub.s32 2, %v594
        %v596 = vrot.slane %v322, %v595
        %v599 = vunpack.c.l.b16 %v591
        %v600 = vunpack.c.l.b16 %v592
        %v601 = vpack.c.b16 %v600, %v599
        %v604 = vsel %vm334, %v590, 0
        %606 = vmatprep.subr.bf16.mxu0 0
        %607 = vmatpush1.bf16.msra.mxu0 %v601
        %608 = vmatprep.subr.bf16.mxu0 0
        %609 = vmatpush1.bf16.msra.mxu0 0
        %610 = vmatprep.subr.bf16.mxu0 0
        %611 = vmatpush1.bf16.msra.mxu0 0
        %612 = vmatprep.subr.bf16.mxu0 0
        %613 = vmatpush1.bf16.msra.mxu0 0
        %614 = vmatprep.subr.bf16.mxu0 0
        %615 = vmatpush1.bf16.msra.mxu0 0
        %616 = vmatprep.subr.bf16.mxu0 0
        %617 = vmatpush1.bf16.msra.mxu0 0
        %618 = vmatprep.subr.bf16.mxu0 0
        %619 = vmatpush1.bf16.msra.mxu0 0
        %620 = vmatprep.subr.bf16.mxu0 0
        %621 = vmatpush1.bf16.msra.mxu0 0
        %622 = vmatprep.subr.bf16.mxu0 0
        %623 = vmatpush1.bf16.msra.mxu0 0
        %624 = vmatprep.subr.bf16.mxu0 0
        %625 = vmatpush1.bf16.msra.mxu0 0
        %626 = vmatprep.subr.bf16.mxu0 0
        %627 = vmatpush1.bf16.msra.mxu0 0
        %628 = vmatprep.subr.bf16.mxu0 0
        %629 = vmatpush1.bf16.msra.mxu0 0
        %630 = vmatprep.subr.bf16.mxu0 0
        %631 = vmatpush1.bf16.msra.mxu0 0
        %632 = vmatprep.subr.bf16.mxu0 0
        %633 = vmatpush1.bf16.msra.mxu0 0
        %634 = vmatprep.subr.bf16.mxu0 0
        %635 = vmatpush1.bf16.msra.mxu0 0
        %636 = vmatprep.subr.bf16.mxu0 0
        %637 = vmatpush1.bf16.msra.mxu0 0
        %638 = vmatprep.mubr.bf16.mxu0 0
        %639 = vmatmul.mubr.bf16.gmra.mrb[0].mxu0 %v604
        %v640 = vpop.f32.mrb[0].mxu0
        %v641 = vadd.f32 %v596, %v640
        %v642 = vpop.f32.mrb[0].mxu0
        %v643 = vpop.f32.mrb[0].mxu0
        %v644 = vpop.f32.mrb[0].mxu0
        %645 = vdwg.mxu0
        %646 = vst [vmem:[%s301] sm:$0x3] %v641
        %s647 = sand.u32 %s191, 1
        %s648 = scalar_lea.sflag [#allocation3], %s647
        %s649 = sand.u32 %s191, 1
        %s650 = smul.addr %s649, 2
        %s651 = scalar_lea.vmem [#allocation2], %s650
        // Predicated region
        $region49: #{tpu_custom_call.1} parent=47 // pred_check
          %p652 = pneg %p201
        $region50: #{tpu_custom_call.1} parent=47 // pred_check_branch
          %654 = sbr.rel (%p652) target = $region52
        $region51: #{tpu_custom_call.1} parent=47 // pred_region
          %s656 = ssub.s32 32, 32
          %657 = vsyncadd %s648, %s656
          %s658 = smul.addr %s21, 32
          %s659 = scalar_lea.hbm %s7, %s658
          %s661 = sshll.u32 %s651, 4
          %s662 = int_to_ptr.vmem [resolvable:$true] %s661
          %664 = dma.vmem_to_hbm [thread:$0]  %s662, 32, %s659, %s648
        $region52: #{tpu_custom_call.1} parent=47 // pred_fallthru
          _
      $region48: #{tpu_custom_call.1} parent=5 // pred_fallthru
        _
      %p665 = scmp.le.s32.totalorder 2, %s16
      // Predicated region
      $region53: #{tpu_custom_call.1} parent=5 // pred_check
        %p666 = pneg %p665
      $region54: #{tpu_custom_call.1} parent=5 // pred_check_branch
        %668 = sbr.rel (%p666) target = $region56
      $region55: #{tpu_custom_call.1} parent=5 // pred_region
        %s669 = ssub.s32 %s16, 2
        // Predicated region
        $region57: #{tpu_custom_call.1} parent=55 // pred_check
          %p670 = pneg %p207
        $region58: #{tpu_custom_call.1} parent=55 // pred_check_branch
          %672 = sbr.rel (%p670) target = $region60
        $region59: #{tpu_custom_call.1} parent=55 // pred_region
          %s673 = sand.u32 %s192, 1
          %s674 = scalar_lea.sflag [#allocation3], %s673
          %s675 = sand.u32 %s192, 1
          %s676 = smul.addr %s675, 2
          %s677 = scalar_lea.vmem [#allocation2], %s676
          %678 = dma.done %s674, 32
        $region60: #{tpu_custom_call.1} parent=55 // pred_fallthru
          _
      $region56: #{tpu_custom_call.1} parent=5 // pred_fallthru
        _
    $region6: #{tpu_custom_call.1} parent=1 // loop_footer
      %s20 = sadd.s32 1, %s16
    $region7: #{tpu_custom_call.1} parent=1 // loop_footer_branch
      %15 = sbr.rel target = $region3
    $region8: #{tpu_custom_call.1} parent=1 // loop_exit
      _
    %679 = vsyncpa [#allocation3], 1
    %s680 = scalar_lea.sflag [#allocation3], 1
    %681 = vsyncpa %s680, 1

</llo_original>
